<compile_context>
chip_gen: v5e
topology: v5e:2x2
jax: 0.10.0
libtpu: 0.0.40
codegen_flags: <defaults>
</compile_context>

<pallas_src>
import jax
import jax.numpy as jnp
from jax import lax
from jax.experimental import pallas as pl
from jax.experimental.pallas import tpu as pltpu


# ------------------------------- the kernel -------------------------------

def inbatch_kernel(hp_ref, q_ref, c_ref, sp_ref, out_ref):
    # hyper-parameters from SMEM (no recompile when they change)
    inv_tau = hp_ref[0]
    inv_tau_span = hp_ref[1]
    alpha = hp_ref[2]
    beta = hp_ref[3]
    gamma = hp_ref[4]

    q = q_ref[...]            # [B, D]  (native dtype feeds the MXU; bf16 OK)
    c = c_ref[...]
    sp = sp_ref[...]
    B = q.shape[0]
    inv_B = 1.0 / B

    # f32 copies only for the cheap O(B*D) element-wise diagonal path
    qf = q.astype(jnp.float32)
    cf = c.astype(jnp.float32)
    spf = sp.astype(jnp.float32)

    # ---- MXU: exactly two matmuls ----------------------------------------
    # sentence scores: scores_c == scores_q^T, so one q @ c^T suffices.
    raw_qc = lax.dot_general(q, c, (((1,), (1,)), ((), ())),
                             preferred_element_type=jnp.float32)       # [B, B]
    # span scores: fuse the two matmuls into one stacked [2B, D] @ sp^T.
    qc = jnp.concatenate([q, c], axis=0)                                # [2B, D]
    raw_sp = lax.dot_general(qc, sp, (((1,), (1,)), ((), ())),
                             preferred_element_type=jnp.float32)        # [2B, B]

    # 1/tau applied to the f32 scores after the matmul (not to [B,D] inputs)
    scores_q = raw_qc * inv_tau
    scores_qsp = raw_sp[:B] * inv_tau_span
    scores_csp = raw_sp[B:] * inv_tau_span

    # ---- CE diagonals straight from the embeddings (VPU, O(B*D)) ---------
    diag_qc = jnp.sum(qf * cf, axis=-1, keepdims=True) * inv_tau        # [B, 1]
    diag_qsp = jnp.sum(qf * spf, axis=-1, keepdims=True) * inv_tau_span
    diag_csp = jnp.sum(cf * spf, axis=-1, keepdims=True) * inv_tau_span

    col = lax.broadcasted_iota(jnp.int32, (B, B), 1)
    labels = lax.broadcasted_iota(jnp.int32, (B, 1), 0)
    big = jnp.int32(2 ** 30)

    # ---- sentence-level contrastive loss + accuracy -----------------------
    rowmax_q = jnp.max(scores_q, axis=-1, keepdims=True)                # [B, 1]
    lse_q = rowmax_q + jnp.log(
        jnp.sum(jnp.exp(scores_q - rowmax_q), axis=-1, keepdims=True))
    # row-lse of scores_c (= scores_q^T) == column-lse of scores_q
    colmax_q = jnp.max(scores_q, axis=0, keepdims=True)                 # [1, B]
    lse_c = colmax_q + jnp.log(
        jnp.sum(jnp.exp(scores_q - colmax_q), axis=0, keepdims=True))   # [1, B]

    ce_q = jnp.sum(lse_q - diag_qc, axis=0, keepdims=True)              # (1, 1)
    ce_c = (jnp.sum(lse_c, axis=1, keepdims=True)
            - jnp.sum(diag_qc, axis=0, keepdims=True))                  # (1, 1)
    loss_crop = 0.5 * (ce_q + ce_c) * inv_B

    # torch.argmax first-index semantics; reuses rowmax_q
    pred_q = jnp.min(jnp.where(scores_q == rowmax_q, col, big),
                     axis=-1, keepdims=True)
    acc_sent = 100.0 * jnp.sum((pred_q == labels).astype(jnp.float32),
                               axis=0, keepdims=True) * inv_B

    # ---- span-level loss + accuracy + KL distillation ----------------------
    rowmax_qsp = jnp.max(scores_qsp, axis=-1, keepdims=True)
    exp_qsp = jnp.exp(scores_qsp - rowmax_qsp)
    sumexp_qsp = jnp.sum(exp_qsp, axis=-1, keepdims=True)
    lse_qsp = rowmax_qsp + jnp.log(sumexp_qsp)         # shared: CE + student

    rowmax_csp = jnp.max(scores_csp, axis=-1, keepdims=True)
    exp_csp = jnp.exp(scores_csp - rowmax_csp)
    sumexp_csp = jnp.sum(exp_csp, axis=-1, keepdims=True)
    lse_csp = rowmax_csp + jnp.log(sumexp_csp)         # shared: CE + teacher

    ce_qsp = jnp.sum(lse_qsp - diag_qsp, axis=0, keepdims=True)
    ce_csp = jnp.sum(lse_csp - diag_csp, axis=0, keepdims=True)
    loss_sp = 0.5 * (ce_qsp + ce_csp) * inv_B

    pred_sp = jnp.min(jnp.where(scores_qsp == rowmax_qsp, col, big),
                      axis=-1, keepdims=True)
    acc_sp = 100.0 * jnp.sum((pred_sp == labels).astype(jnp.float32),
                             axis=0, keepdims=True) * inv_B

    # KLDivLoss(reduction='none')(log_softmax(scores_qsp), softmax(scores_csp))
    #   = teacher * (log(teacher) - student), summed over dim=1, mean over batch
    student = scores_qsp - lse_qsp
    log_teacher = scores_csp - lse_csp
    teacher = exp_csp / sumexp_csp                     # reuses exp_csp (no extra exp)
    kl = jnp.sum(teacher * (log_teacher - student), axis=-1, keepdims=True)
    loss_distil = jnp.sum(kl, axis=0, keepdims=True) * inv_B

    total = alpha * loss_crop + beta * loss_sp + gamma * loss_distil

    # ---- pack the 6 scalars into a single (1, 8) lane-packed store ---------
    vals = (total, acc_sent, loss_crop, loss_sp, acc_sp, loss_distil)
    lane = lax.broadcasted_iota(jnp.int32, (1, 8), 1)
    packed = jnp.zeros((1, 8), jnp.float32)
    for i, v in enumerate(vals):
        packed = packed + jnp.where(lane == i, v, 0.0)
    out_ref[...] = packed


# -------------------------------- wrapper ----------------------------------

def inbatch_interaction(qemb, cemb, spemb, *, tau, tau_span, alpha, beta, gamma):
    B, D = qemb.shape
    hparams = jnp.array([1.0 / tau, 1.0 / tau_span, alpha, beta, gamma],
                        dtype=jnp.float32)

    emb_spec = pl.BlockSpec((B, D), lambda i: (0, 0))
    packed = pl.pallas_call(
        inbatch_kernel,
        out_shape=jax.ShapeDtypeStruct((1, 8), jnp.float32),
        grid=(1,),
        in_specs=[pl.BlockSpec(memory_space=pltpu.MemorySpace.SMEM),  # hparams
                  emb_spec, emb_spec, emb_spec],
        out_specs=pl.BlockSpec((1, 8), lambda i: (0, 0)),
    )(hparams, qemb, cemb, spemb)

    loss = packed[0, 0]
    acc_sent = packed[0, 1]
    logs = {
        "loss_sent": packed[0, 2],
        "acc_sent": acc_sent,
        "loss_span": packed[0, 3],
        "acc_span": packed[0, 4],
        "loss_span_distil": packed[0, 5],
    }
    return {
        "loss": loss,
        "acc": acc_sent,
        "logs": logs,
        "qemb": qemb,
        "cemb": cemb,
        "spemb": spemb,
    }


# ---------------------- plain-JAX glue: stand-in encoder -------------------
# TODO(synk): the real `retriever` transformer encoder, torch.distributed
# gather, and the hard-negative miner are external dependencies with no
# in-script equivalent; the encoder is replaced by a deterministic
# embedding-lookup + masked-mean-pool stand-in.

def encode(emb_table, tokens, mask):
    vecs = emb_table[tokens]                           # [B, S, D]
    m = mask.astype(jnp.float32)[..., None]            # [B, S, 1]
    return (vecs * m).sum(axis=1) / jnp.maximum(m.sum(axis=1), 1.0)  # [B, D]


# ------------------------- pure-JAX reference check ------------------------

def reference(qemb, cemb, spemb, *, tau, tau_span, alpha, beta, gamma):
    B = qemb.shape[0]
    labels = jnp.arange(B)

    def ce(s):
        return jnp.mean(jax.nn.logsumexp(s, axis=-1) - s[labels, labels])

    def acc(s):
        return 100.0 * jnp.mean((jnp.argmax(s, axis=-1) == labels).astype(jnp.float32))

    scores_q = (qemb / tau) @ cemb.T
    scores_c = (cemb / tau) @ qemb.T
    loss_crop = 0.5 * (ce(scores_q) + ce(scores_c))
    scores_qsp = (qemb / tau_span) @ spemb.T
    scores_csp = (cemb / tau_span) @ spemb.T
    loss_sp = 0.5 * (ce(scores_qsp) + ce(scores_csp))
    student = jax.nn.log_softmax(scores_qsp, axis=1)
    teacher = jax.nn.softmax(scores_csp, axis=1)
    kl = jnp.sum(teacher * (jnp.log(teacher) - student), axis=1).mean()
    total = alpha * loss_crop + beta * loss_sp + gamma * kl
    return total, acc(scores_q), loss_crop, loss_sp, acc(scores_qsp), kl


# --------------------------------- main -------------------------------------

if __name__ == "__main__":
    B, S, D, V = 8, 8, 32, 101          # batch, seq len, hidden, vocab
    tau, tau_span = 0.1, 0.1            # opt.temperature, opt.temperature_span
    alpha, beta, gamma = 1.0, 0.5, 0.5  # opt.alpha, opt.beta, opt.gamma

    key = jax.random.PRNGKey(0)
    k1, k2, k3, k4, k5 = jax.random.split(key, 5)
    emb_table = jax.random.normal(k1, (V, D), dtype=jnp.float32)

    q_tokens = jax.random.randint(k2, (B, S), 0, V)
    c_tokens = jax.random.randint(k3, (B, S), 0, V)
    span_tokens = jax.random.randint(k4, (B, S), 0, V)
    q_mask = jnp.ones((B, S), jnp.int32)
    c_mask = jnp.ones((B, S), jnp.int32)
    span_mask = (jax.random.uniform(k5, (B, S)) > 0.2).astype(jnp.int32)

    qemb = encode(emb_table, q_tokens, q_mask)         # encoder(q_tokens, q_mask)[0]
    cemb = encode(emb_table, c_tokens, c_mask)         # d_encoder(c_tokens, c_mask)[0]
    spemb = encode(emb_table, span_tokens, span_mask)  # encoder(span_tokens, span_mask)[0]

    out = inbatch_interaction(qemb, cemb, spemb,
                              tau=tau, tau_span=tau_span,
                              alpha=alpha, beta=beta, gamma=gamma)
    jax.block_until_ready(out["loss"])

    ref = reference(qemb, cemb, spemb, tau=tau, tau_span=tau_span,
                    alpha=alpha, beta=beta, gamma=gamma)
    got = (out["loss"], out["acc"], out["logs"]["loss_sent"],
           out["logs"]["loss_span"], out["logs"]["acc_span"],
           out["logs"]["loss_span_distil"])
    for g, r in zip(got, ref):
        assert jnp.allclose(g, r, rtol=1e-4, atol=1e-4), (g, r)

    print("KERNEL_OK")
</pallas_src>

<mosaic_0001>
module attributes {stable_mosaic.version = 11 : i64} {
  func.func @inbatch_kernel(%arg0: i32, %arg1: memref<5xf32, #tpu.memory_space<smem>>, %arg2: memref<8x32xf32, #tpu.memory_space<vmem>>, %arg3: memref<8x32xf32, #tpu.memory_space<vmem>>, %arg4: memref<8x32xf32, #tpu.memory_space<vmem>>, %arg5: memref<1x8xf32, #tpu.memory_space<vmem>>) attributes {dimension_semantics = [#tpu.dimension_semantics<arbitrary>], iteration_bounds = array<i64: 1>, scalar_prefetch = 0 : i64, scratch_operands = 0 : i64, tpu.core_type = #tpu.core_type<tc>, window_params = [{transform_indices = @transform_0, window_bounds = array<i64: 5>}, {pipeline_mode = #tpu.pipeline_mode<synchronous>, transform_indices = @transform_1, window_bounds = array<i64: 8, 32>}, {pipeline_mode = #tpu.pipeline_mode<synchronous>, transform_indices = @transform_2, window_bounds = array<i64: 8, 32>}, {pipeline_mode = #tpu.pipeline_mode<synchronous>, transform_indices = @transform_3, window_bounds = array<i64: 8, 32>}, {pipeline_mode = #tpu.pipeline_mode<synchronous>, transform_indices = @transform_4, window_bounds = array<i64: 1, 8>}]} {
    %c0 = arith.constant 0 : index
    %0 = memref.load %arg1[%c0] : memref<5xf32, #tpu.memory_space<smem>>
    %c1 = arith.constant 1 : index
    %1 = memref.load %arg1[%c1] : memref<5xf32, #tpu.memory_space<smem>>
    %c2 = arith.constant 2 : index
    %2 = memref.load %arg1[%c2] : memref<5xf32, #tpu.memory_space<smem>>
    %c3 = arith.constant 3 : index
    %3 = memref.load %arg1[%c3] : memref<5xf32, #tpu.memory_space<smem>>
    %c4 = arith.constant 4 : index
    %4 = memref.load %arg1[%c4] : memref<5xf32, #tpu.memory_space<smem>>
    %c0_0 = arith.constant 0 : index
    %c0_1 = arith.constant 0 : index
    %5 = vector.load %arg2[%c0_0, %c0_1] : memref<8x32xf32, #tpu.memory_space<vmem>>, vector<8x32xf32>
    %c0_2 = arith.constant 0 : index
    %c0_3 = arith.constant 0 : index
    %6 = vector.load %arg3[%c0_2, %c0_3] : memref<8x32xf32, #tpu.memory_space<vmem>>, vector<8x32xf32>
    %c0_4 = arith.constant 0 : index
    %c0_5 = arith.constant 0 : index
    %7 = vector.load %arg4[%c0_4, %c0_5] : memref<8x32xf32, #tpu.memory_space<vmem>>, vector<8x32xf32>
    %cst = arith.constant dense<0.000000e+00> : vector<8x8xf32>
    %8 = tpu.matmul %5, %6, %cst {dimension_numbers = #tpu.dot_dimension_numbers<[1], [1], [0], [0], [0, 0, 1, 0], [], []>} : vector<8x32xf32>, vector<8x32xf32>, vector<8x8xf32> -> vector<8x8xf32>
    %9 = tpu.concatenate %5, %6 in 0 : vector<8x32xf32>, vector<8x32xf32> -> vector<16x32xf32>
    %cst_6 = arith.constant dense<0.000000e+00> : vector<16x8xf32>
    %10 = tpu.matmul %9, %7, %cst_6 {dimension_numbers = #tpu.dot_dimension_numbers<[1], [1], [0], [0], [0, 0, 1, 0], [], []>} : vector<16x32xf32>, vector<8x32xf32>, vector<16x8xf32> -> vector<16x8xf32>
    %11 = vector.broadcast %0 : f32 to vector<8x8xf32>
    %12 = arith.mulf %8, %11 : vector<8x8xf32>
    %13 = vector.extract_strided_slice %10 {offsets = [0, 0], sizes = [8, 8], strides = [1, 1]} : vector<16x8xf32> to vector<8x8xf32>
    %14 = vector.broadcast %1 : f32 to vector<8x8xf32>
    %15 = arith.mulf %13, %14 : vector<8x8xf32>
    %16 = vector.extract_strided_slice %10 {offsets = [8, 0], sizes = [8, 8], strides = [1, 1]} : vector<16x8xf32> to vector<8x8xf32>
    %17 = vector.broadcast %1 : f32 to vector<8x8xf32>
    %18 = arith.mulf %16, %17 : vector<8x8xf32>
    %19 = arith.mulf %5, %6 : vector<8x32xf32>
    %cst_7 = arith.constant dense<0.000000e+00> : vector<8xf32>
    %20 = vector.multi_reduction <add>, %19, %cst_7 [1] : vector<8x32xf32> to vector<8xf32>
    %21 = vector.shape_cast %20 : vector<8xf32> to vector<8x1xf32>
    %22 = vector.broadcast %0 : f32 to vector<8x1xf32>
    %23 = arith.mulf %21, %22 : vector<8x1xf32>
    %24 = arith.mulf %5, %7 : vector<8x32xf32>
    %cst_8 = arith.constant dense<0.000000e+00> : vector<8xf32>
    %25 = vector.multi_reduction <add>, %24, %cst_8 [1] : vector<8x32xf32> to vector<8xf32>
    %26 = vector.shape_cast %25 : vector<8xf32> to vector<8x1xf32>
    %27 = vector.broadcast %1 : f32 to vector<8x1xf32>
    %28 = arith.mulf %26, %27 : vector<8x1xf32>
    %29 = arith.mulf %6, %7 : vector<8x32xf32>
    %cst_9 = arith.constant dense<0.000000e+00> : vector<8xf32>
    %30 = vector.multi_reduction <add>, %29, %cst_9 [1] : vector<8x32xf32> to vector<8xf32>
    %31 = vector.shape_cast %30 : vector<8xf32> to vector<8x1xf32>
    %32 = vector.broadcast %1 : f32 to vector<8x1xf32>
    %33 = arith.mulf %31, %32 : vector<8x1xf32>
    %34 = tpu.iota {dimensions = array<i32: 1>} : vector<8x8xi32>
    %35 = tpu.iota {dimensions = array<i32: 0>} : vector<8x1xi32>
    %cst_10 = arith.constant dense<0xFF800000> : vector<8xf32>
    %36 = vector.multi_reduction <maximumf>, %12, %cst_10 [1] : vector<8x8xf32> to vector<8xf32>
    %37 = vector.shape_cast %36 : vector<8xf32> to vector<8x1xf32>
    %38 = vector.broadcast %37 : vector<8x1xf32> to vector<8x8xf32>
    %39 = arith.subf %12, %38 : vector<8x8xf32>
    %40 = math.exp %39 : vector<8x8xf32>
    %cst_11 = arith.constant dense<0.000000e+00> : vector<8xf32>
    %41 = vector.multi_reduction <add>, %40, %cst_11 [1] : vector<8x8xf32> to vector<8xf32>
    %42 = vector.shape_cast %41 : vector<8xf32> to vector<8x1xf32>
    %43 = math.log %42 : vector<8x1xf32>
    %44 = arith.addf %37, %43 : vector<8x1xf32>
    %cst_12 = arith.constant dense<0xFF800000> : vector<8xf32>
    %45 = vector.multi_reduction <maximumf>, %12, %cst_12 [0] : vector<8x8xf32> to vector<8xf32>
    %46 = vector.shape_cast %45 : vector<8xf32> to vector<1x8xf32>
    %47 = vector.broadcast %46 : vector<1x8xf32> to vector<8x8xf32>
    %48 = arith.subf %12, %47 : vector<8x8xf32>
    %49 = math.exp %48 : vector<8x8xf32>
    %cst_13 = arith.constant dense<0.000000e+00> : vector<8xf32>
    %50 = vector.multi_reduction <add>, %49, %cst_13 [0] : vector<8x8xf32> to vector<8xf32>
    %51 = vector.shape_cast %50 : vector<8xf32> to vector<1x8xf32>
    %52 = math.log %51 : vector<1x8xf32>
    %53 = arith.addf %46, %52 : vector<1x8xf32>
    %54 = arith.subf %44, %23 : vector<8x1xf32>
    %cst_14 = arith.constant dense<0.000000e+00> : vector<1xf32>
    %55 = vector.multi_reduction <add>, %54, %cst_14 [0] : vector<8x1xf32> to vector<1xf32>
    %56 = vector.shape_cast %55 : vector<1xf32> to vector<1x1xf32>
    %cst_15 = arith.constant dense<0.000000e+00> : vector<1xf32>
    %57 = vector.multi_reduction <add>, %53, %cst_15 [1] : vector<1x8xf32> to vector<1xf32>
    %58 = vector.shape_cast %57 : vector<1xf32> to vector<1x1xf32>
    %cst_16 = arith.constant dense<0.000000e+00> : vector<1xf32>
    %59 = vector.multi_reduction <add>, %23, %cst_16 [0] : vector<8x1xf32> to vector<1xf32>
    %60 = vector.shape_cast %59 : vector<1xf32> to vector<1x1xf32>
    %61 = arith.subf %58, %60 : vector<1x1xf32>
    %62 = arith.addf %56, %61 : vector<1x1xf32>
    %cst_17 = arith.constant 5.000000e-01 : f32
    %63 = vector.broadcast %cst_17 : f32 to vector<1x1xf32>
    %64 = arith.mulf %63, %62 : vector<1x1xf32>
    %cst_18 = arith.constant 1.250000e-01 : f32
    %65 = vector.broadcast %cst_18 : f32 to vector<1x1xf32>
    %66 = arith.mulf %64, %65 : vector<1x1xf32>
    %67 = vector.broadcast %37 : vector<8x1xf32> to vector<8x8xf32>
    %68 = arith.cmpf oeq, %12, %67 : vector<8x8xf32>
    %c1073741824_i32 = arith.constant 1073741824 : i32
    %69 = vector.broadcast %c1073741824_i32 : i32 to vector<8x8xi32>
    %70 = arith.select %68, %34, %69 : vector<8x8xi1>, vector<8x8xi32>
    %cst_19 = arith.constant dense<2147483647> : vector<8xi32>
    %71 = vector.multi_reduction <minsi>, %70, %cst_19 [1] : vector<8x8xi32> to vector<8xi32>
    %72 = vector.shape_cast %71 : vector<8xi32> to vector<8x1xi32>
    %73 = arith.cmpi eq, %72, %35 : vector<8x1xi32>
    %74 = arith.extui %73 : vector<8x1xi1> to vector<8x1xi32>
    %75 = arith.sitofp %74 : vector<8x1xi32> to vector<8x1xf32>
    %cst_20 = arith.constant dense<0.000000e+00> : vector<1xf32>
    %76 = vector.multi_reduction <add>, %75, %cst_20 [0] : vector<8x1xf32> to vector<1xf32>
    %77 = vector.shape_cast %76 : vector<1xf32> to vector<1x1xf32>
    %cst_21 = arith.constant 1.000000e+02 : f32
    %78 = vector.broadcast %cst_21 : f32 to vector<1x1xf32>
    %79 = arith.mulf %78, %77 : vector<1x1xf32>
    %cst_22 = arith.constant 1.250000e-01 : f32
    %80 = vector.broadcast %cst_22 : f32 to vector<1x1xf32>
    %81 = arith.mulf %79, %80 : vector<1x1xf32>
    %cst_23 = arith.constant dense<0xFF800000> : vector<8xf32>
    %82 = vector.multi_reduction <maximumf>, %15, %cst_23 [1] : vector<8x8xf32> to vector<8xf32>
    %83 = vector.shape_cast %82 : vector<8xf32> to vector<8x1xf32>
    %84 = vector.broadcast %83 : vector<8x1xf32> to vector<8x8xf32>
    %85 = arith.subf %15, %84 : vector<8x8xf32>
    %86 = math.exp %85 : vector<8x8xf32>
    %cst_24 = arith.constant dense<0.000000e+00> : vector<8xf32>
    %87 = vector.multi_reduction <add>, %86, %cst_24 [1] : vector<8x8xf32> to vector<8xf32>
    %88 = vector.shape_cast %87 : vector<8xf32> to vector<8x1xf32>
    %89 = math.log %88 : vector<8x1xf32>
    %90 = arith.addf %83, %89 : vector<8x1xf32>
    %cst_25 = arith.constant dense<0xFF800000> : vector<8xf32>
    %91 = vector.multi_reduction <maximumf>, %18, %cst_25 [1] : vector<8x8xf32> to vector<8xf32>
    %92 = vector.shape_cast %91 : vector<8xf32> to vector<8x1xf32>
    %93 = vector.broadcast %92 : vector<8x1xf32> to vector<8x8xf32>
    %94 = arith.subf %18, %93 : vector<8x8xf32>
    %95 = math.exp %94 : vector<8x8xf32>
    %cst_26 = arith.constant dense<0.000000e+00> : vector<8xf32>
    %96 = vector.multi_reduction <add>, %95, %cst_26 [1] : vector<8x8xf32> to vector<8xf32>
    %97 = vector.shape_cast %96 : vector<8xf32> to vector<8x1xf32>
    %98 = math.log %97 : vector<8x1xf32>
    %99 = arith.addf %92, %98 : vector<8x1xf32>
    %100 = arith.subf %90, %28 : vector<8x1xf32>
    %cst_27 = arith.constant dense<0.000000e+00> : vector<1xf32>
    %101 = vector.multi_reduction <add>, %100, %cst_27 [0] : vector<8x1xf32> to vector<1xf32>
    %102 = vector.shape_cast %101 : vector<1xf32> to vector<1x1xf32>
    %103 = arith.subf %99, %33 : vector<8x1xf32>
    %cst_28 = arith.constant dense<0.000000e+00> : vector<1xf32>
    %104 = vector.multi_reduction <add>, %103, %cst_28 [0] : vector<8x1xf32> to vector<1xf32>
    %105 = vector.shape_cast %104 : vector<1xf32> to vector<1x1xf32>
    %106 = arith.addf %102, %105 : vector<1x1xf32>
    %cst_29 = arith.constant 5.000000e-01 : f32
    %107 = vector.broadcast %cst_29 : f32 to vector<1x1xf32>
    %108 = arith.mulf %107, %106 : vector<1x1xf32>
    %cst_30 = arith.constant 1.250000e-01 : f32
    %109 = vector.broadcast %cst_30 : f32 to vector<1x1xf32>
    %110 = arith.mulf %108, %109 : vector<1x1xf32>
    %111 = vector.broadcast %83 : vector<8x1xf32> to vector<8x8xf32>
    %112 = arith.cmpf oeq, %15, %111 : vector<8x8xf32>
    %c1073741824_i32_31 = arith.constant 1073741824 : i32
    %113 = vector.broadcast %c1073741824_i32_31 : i32 to vector<8x8xi32>
    %114 = arith.select %112, %34, %113 : vector<8x8xi1>, vector<8x8xi32>
    %cst_32 = arith.constant dense<2147483647> : vector<8xi32>
    %115 = vector.multi_reduction <minsi>, %114, %cst_32 [1] : vector<8x8xi32> to vector<8xi32>
    %116 = vector.shape_cast %115 : vector<8xi32> to vector<8x1xi32>
    %117 = arith.cmpi eq, %116, %35 : vector<8x1xi32>
    %118 = arith.extui %117 : vector<8x1xi1> to vector<8x1xi32>
    %119 = arith.sitofp %118 : vector<8x1xi32> to vector<8x1xf32>
    %cst_33 = arith.constant dense<0.000000e+00> : vector<1xf32>
    %120 = vector.multi_reduction <add>, %119, %cst_33 [0] : vector<8x1xf32> to vector<1xf32>
    %121 = vector.shape_cast %120 : vector<1xf32> to vector<1x1xf32>
    %cst_34 = arith.constant 1.000000e+02 : f32
    %122 = vector.broadcast %cst_34 : f32 to vector<1x1xf32>
    %123 = arith.mulf %122, %121 : vector<1x1xf32>
    %cst_35 = arith.constant 1.250000e-01 : f32
    %124 = vector.broadcast %cst_35 : f32 to vector<1x1xf32>
    %125 = arith.mulf %123, %124 : vector<1x1xf32>
    %126 = vector.broadcast %90 : vector<8x1xf32> to vector<8x8xf32>
    %127 = arith.subf %15, %126 : vector<8x8xf32>
    %128 = vector.broadcast %99 : vector<8x1xf32> to vector<8x8xf32>
    %129 = arith.subf %18, %128 : vector<8x8xf32>
    %130 = vector.broadcast %97 : vector<8x1xf32> to vector<8x8xf32>
    %131 = arith.divf %95, %130 : vector<8x8xf32>
    %132 = arith.subf %129, %127 : vector<8x8xf32>
    %133 = arith.mulf %131, %132 : vector<8x8xf32>
    %cst_36 = arith.constant dense<0.000000e+00> : vector<8xf32>
    %134 = vector.multi_reduction <add>, %133, %cst_36 [1] : vector<8x8xf32> to vector<8xf32>
    %135 = vector.shape_cast %134 : vector<8xf32> to vector<8x1xf32>
    %cst_37 = arith.constant dense<0.000000e+00> : vector<1xf32>
    %136 = vector.multi_reduction <add>, %135, %cst_37 [0] : vector<8x1xf32> to vector<1xf32>
    %137 = vector.shape_cast %136 : vector<1xf32> to vector<1x1xf32>
    %cst_38 = arith.constant 1.250000e-01 : f32
    %138 = vector.broadcast %cst_38 : f32 to vector<1x1xf32>
    %139 = arith.mulf %137, %138 : vector<1x1xf32>
    %140 = vector.broadcast %2 : f32 to vector<1x1xf32>
    %141 = arith.mulf %140, %66 : vector<1x1xf32>
    %142 = vector.broadcast %3 : f32 to vector<1x1xf32>
    %143 = arith.mulf %142, %110 : vector<1x1xf32>
    %144 = arith.addf %141, %143 : vector<1x1xf32>
    %145 = vector.broadcast %4 : f32 to vector<1x1xf32>
    %146 = arith.mulf %145, %139 : vector<1x1xf32>
    %147 = arith.addf %144, %146 : vector<1x1xf32>
    %148 = tpu.iota {dimensions = array<i32: 1>} : vector<1x8xi32>
    %cst_39 = arith.constant 0.000000e+00 : f32
    %149 = vector.broadcast %cst_39 : f32 to vector<1x8xf32>
    %c0_i32 = arith.constant 0 : i32
    %150 = vector.broadcast %c0_i32 : i32 to vector<1x8xi32>
    %151 = arith.cmpi eq, %148, %150 : vector<1x8xi32>
    %cst_40 = arith.constant 0.000000e+00 : f32
    %152 = vector.shape_cast %147 : vector<1x1xf32> to vector<1x1xf32>
    %153 = vector.broadcast %152 : vector<1x1xf32> to vector<1x8xf32>
    %154 = vector.broadcast %cst_40 : f32 to vector<1x8xf32>
    %155 = arith.select %151, %153, %154 : vector<1x8xi1>, vector<1x8xf32>
    %156 = arith.addf %149, %155 : vector<1x8xf32>
    %c1_i32 = arith.constant 1 : i32
    %157 = vector.broadcast %c1_i32 : i32 to vector<1x8xi32>
    %158 = arith.cmpi eq, %148, %157 : vector<1x8xi32>
    %cst_41 = arith.constant 0.000000e+00 : f32
    %159 = vector.shape_cast %81 : vector<1x1xf32> to vector<1x1xf32>
    %160 = vector.broadcast %159 : vector<1x1xf32> to vector<1x8xf32>
    %161 = vector.broadcast %cst_41 : f32 to vector<1x8xf32>
    %162 = arith.select %158, %160, %161 : vector<1x8xi1>, vector<1x8xf32>
    %163 = arith.addf %156, %162 : vector<1x8xf32>
    %c2_i32 = arith.constant 2 : i32
    %164 = vector.broadcast %c2_i32 : i32 to vector<1x8xi32>
    %165 = arith.cmpi eq, %148, %164 : vector<1x8xi32>
    %cst_42 = arith.constant 0.000000e+00 : f32
    %166 = vector.shape_cast %66 : vector<1x1xf32> to vector<1x1xf32>
    %167 = vector.broadcast %166 : vector<1x1xf32> to vector<1x8xf32>
    %168 = vector.broadcast %cst_42 : f32 to vector<1x8xf32>
    %169 = arith.select %165, %167, %168 : vector<1x8xi1>, vector<1x8xf32>
    %170 = arith.addf %163, %169 : vector<1x8xf32>
    %c3_i32 = arith.constant 3 : i32
    %171 = vector.broadcast %c3_i32 : i32 to vector<1x8xi32>
    %172 = arith.cmpi eq, %148, %171 : vector<1x8xi32>
    %cst_43 = arith.constant 0.000000e+00 : f32
    %173 = vector.shape_cast %110 : vector<1x1xf32> to vector<1x1xf32>
    %174 = vector.broadcast %173 : vector<1x1xf32> to vector<1x8xf32>
    %175 = vector.broadcast %cst_43 : f32 to vector<1x8xf32>
    %176 = arith.select %172, %174, %175 : vector<1x8xi1>, vector<1x8xf32>
    %177 = arith.addf %170, %176 : vector<1x8xf32>
    %c4_i32 = arith.constant 4 : i32
    %178 = vector.broadcast %c4_i32 : i32 to vector<1x8xi32>
    %179 = arith.cmpi eq, %148, %178 : vector<1x8xi32>
    %cst_44 = arith.constant 0.000000e+00 : f32
    %180 = vector.shape_cast %125 : vector<1x1xf32> to vector<1x1xf32>
    %181 = vector.broadcast %180 : vector<1x1xf32> to vector<1x8xf32>
    %182 = vector.broadcast %cst_44 : f32 to vector<1x8xf32>
    %183 = arith.select %179, %181, %182 : vector<1x8xi1>, vector<1x8xf32>
    %184 = arith.addf %177, %183 : vector<1x8xf32>
    %c5_i32 = arith.constant 5 : i32
    %185 = vector.broadcast %c5_i32 : i32 to vector<1x8xi32>
    %186 = arith.cmpi eq, %148, %185 : vector<1x8xi32>
    %cst_45 = arith.constant 0.000000e+00 : f32
    %187 = vector.shape_cast %139 : vector<1x1xf32> to vector<1x1xf32>
    %188 = vector.broadcast %187 : vector<1x1xf32> to vector<1x8xf32>
    %189 = vector.broadcast %cst_45 : f32 to vector<1x8xf32>
    %190 = arith.select %186, %188, %189 : vector<1x8xi1>, vector<1x8xf32>
    %191 = arith.addf %184, %190 : vector<1x8xf32>
    %c0_46 = arith.constant 0 : index
    %c0_47 = arith.constant 0 : index
    %192 = vector.load %arg5[%c0_46, %c0_47] : memref<1x8xf32, #tpu.memory_space<vmem>>, vector<1x8xf32>
    tpu.vector_store %arg5[%c0_46, %c0_47], %191 {strides = array<i32>} : memref<1x8xf32, #tpu.memory_space<vmem>>, vector<1x8xf32>,
    return
  }
  func.func @transform_0(%arg0: i32) -> i32 {
    %c0_i32 = arith.constant 0 : i32
    %c0_i32_0 = arith.constant 0 : i32
    return %c0_i32 : i32
  }
  func.func @transform_1(%arg0: i32) -> (i32, i32) {
    %c0_i32 = arith.constant 0 : i32
    %c0_i32_0 = arith.constant 0 : i32
    %c0_i32_1 = arith.constant 0 : i32
    return %c0_i32, %c0_i32_0 : i32, i32
  }
  func.func @transform_2(%arg0: i32) -> (i32, i32) {
    %c0_i32 = arith.constant 0 : i32
    %c0_i32_0 = arith.constant 0 : i32
    %c0_i32_1 = arith.constant 0 : i32
    return %c0_i32, %c0_i32_0 : i32, i32
  }
  func.func @transform_3(%arg0: i32) -> (i32, i32) {
    %c0_i32 = arith.constant 0 : i32
    %c0_i32_0 = arith.constant 0 : i32
    %c0_i32_1 = arith.constant 0 : i32
    return %c0_i32, %c0_i32_0 : i32, i32
  }
  func.func @transform_4(%arg0: i32) -> (i32, i32) {
    %c0_i32 = arith.constant 0 : i32
    %c0_i32_0 = arith.constant 0 : i32
    %c0_i32_1 = arith.constant 0 : i32
    return %c0_i32, %c0_i32_0 : i32, i32
  }
}

</mosaic_0001>

<llo_original>
// kernel: tpu_custom_call.1
$region0: #{tpu_custom_call.1}
  #allocation0 [shape = 'u32[]', space=smem, size = 0x4, offset = 0x4, fixed_abs, tag = 'smem constant byte address 0x4 - core index']
  #allocation1 [shape = 'u32[72,128]{1,0:T(1,128)}', space=vmem, size = 0x9000, scoped, tag = 'internal scratch']
  %s0 = inlined_call_operand.hbm [shape: f32[5], index: 0, kind: input, shape index: {}]
  %s1 = inlined_call_operand.hbm [shape: f32[8,32], index: 1, kind: input, shape index: {}]
  %s2 = inlined_call_operand.hbm [shape: f32[8,32], index: 2, kind: input, shape index: {}]
  %s3 = inlined_call_operand.hbm [shape: f32[8,32], index: 3, kind: input, shape index: {}]
  %s4 = inlined_call_operand.hbm [shape: f32[1,8], index: 4, kind: output, shape index: {}]
  %s5 = sld [smem:[#allocation0]]
  $region42: #{tpu_custom_call.1} parent=0
    _
  %s7 = ssub.s32 1, %s5
  %s8 = scalar_select 0, %s7, %s5
  $region1: #{tpu_custom_call.1} parent=0
    #allocation2 [shape = 'u8[512]{0}', space=smem, size = 0x200, scoped, tag = 'input window, operand 0, single buffered']
    #allocation3 [shape = 's32[1]{0}', space=sflag, size = 0x4, scoped, tag = 'scoped memory for tpu_custom_call.1']
    #allocation4 [shape = 's32[1]{0}', space=sflag, size = 0x4, scoped, tag = 'scoped memory for tpu_custom_call.1']
    #allocation5 [shape = 's32[1]{0}', space=sflag, size = 0x4, scoped, tag = 'scoped memory for tpu_custom_call.1']
    #allocation6 [shape = 'u8[4096]{0}', space=vmem, size = 0x1000, scoped, tag = 'input window, operand 1, single buffered']
    #allocation7 [shape = 'u8[4096]{0}', space=vmem, size = 0x1000, scoped, tag = 'input window, operand 2, single buffered']
    #allocation8 [shape = 's32[1]{0}', space=sflag, size = 0x4, scoped, tag = 'scoped memory for tpu_custom_call.1']
    #allocation9 [shape = 'u8[4096]{0}', space=vmem, size = 0x1000, scoped, tag = 'input window, operand 3, single buffered']
    #allocation10 [shape = 'u8[512]{0}', space=vmem, size = 0x400, scoped, tag = 'output window, operand 0, single buffered']
    %9 = vsyncpa [#allocation5], 0
    %10 = vsyncpa [#allocation3], 0
    %11 = vsyncpa [#allocation8], 0
    %12 = vsyncpa [#allocation4], 0
    // Predicated region
    $region2: #{tpu_custom_call.1} parent=1 // pred_check
      _
    $region3: #{tpu_custom_call.1} parent=1 // pred_check_branch
      %14 = sbr.rel (0) target = $region5
    $region4: #{tpu_custom_call.1} parent=1 // pred_region
      %16 = vsyncadd [#allocation5], 0
      %s18 = sshll.u32 %s0, 4
      %s19 = int_to_ptr.hbm [resolvable:$true] %s18
      %21 = dma.hbm_to_smem %s19, 16, [#allocation2], [#allocation5]
    $region5: #{tpu_custom_call.1} parent=1 // pred_fallthru
      _
    // Predicated region
    $region6: #{tpu_custom_call.1} parent=1 // pred_check
      _
    $region7: #{tpu_custom_call.1} parent=1 // pred_check_branch
      %23 = sbr.rel (0) target = $region9
    $region8: #{tpu_custom_call.1} parent=1 // pred_region
      %25 = vsyncadd [#allocation3], 0
      %s27 = sshll.u32 %s1, 4
      %s28 = int_to_ptr.hbm [resolvable:$true] %s27
      %s29 = sshll.u32 [#allocation6], 4
      %s30 = int_to_ptr.vmem [resolvable:$true] %s29
      %32 = dma.hbm_to_vmem [thread:$0]  %s28, 128, %s30, [#allocation3]
    $region9: #{tpu_custom_call.1} parent=1 // pred_fallthru
      _
    // Predicated region
    $region10: #{tpu_custom_call.1} parent=1 // pred_check
      _
    $region11: #{tpu_custom_call.1} parent=1 // pred_check_branch
      %34 = sbr.rel (0) target = $region13
    $region12: #{tpu_custom_call.1} parent=1 // pred_region
      %36 = vsyncadd [#allocation8], 0
      %s38 = sshll.u32 %s2, 4
      %s39 = int_to_ptr.hbm [resolvable:$true] %s38
      %s40 = sshll.u32 [#allocation7], 4
      %s41 = int_to_ptr.vmem [resolvable:$true] %s40
      %43 = dma.hbm_to_vmem [thread:$0]  %s39, 128, %s41, [#allocation8]
    $region13: #{tpu_custom_call.1} parent=1 // pred_fallthru
      _
    // Predicated region
    $region14: #{tpu_custom_call.1} parent=1 // pred_check
      _
    $region15: #{tpu_custom_call.1} parent=1 // pred_check_branch
      %45 = sbr.rel (0) target = $region17
    $region16: #{tpu_custom_call.1} parent=1 // pred_region
      %47 = vsyncadd [#allocation8], 0
      %s49 = sshll.u32 %s3, 4
      %s50 = int_to_ptr.hbm [resolvable:$true] %s49
      %s51 = sshll.u32 [#allocation9], 4
      %s52 = int_to_ptr.vmem [resolvable:$true] %s51
      %54 = dma.hbm_to_vmem [thread:$0]  %s50, 128, %s52, [#allocation8]
    $region17: #{tpu_custom_call.1} parent=1 // pred_fallthru
      _
    // Predicated region
    $region18: #{tpu_custom_call.1} parent=1 // pred_check
      _
    $region19: #{tpu_custom_call.1} parent=1 // pred_check_branch
      %56 = sbr.rel (0) target = $region21
    $region20: #{tpu_custom_call.1} parent=1 // pred_region
      %58 = dma.done [#allocation5], 16
    $region21: #{tpu_custom_call.1} parent=1 // pred_fallthru
      _
    // Predicated region
    $region22: #{tpu_custom_call.1} parent=1 // pred_check
      _
    $region23: #{tpu_custom_call.1} parent=1 // pred_check_branch
      %60 = sbr.rel (0) target = $region25
    $region24: #{tpu_custom_call.1} parent=1 // pred_region
      %62 = dma.done [#allocation3], 128
    $region25: #{tpu_custom_call.1} parent=1 // pred_fallthru
      _
    // Predicated region
    $region26: #{tpu_custom_call.1} parent=1 // pred_check
      _
    $region27: #{tpu_custom_call.1} parent=1 // pred_check_branch
      %64 = sbr.rel (0) target = $region29
    $region28: #{tpu_custom_call.1} parent=1 // pred_region
      %66 = dma.done [#allocation8], 128
    $region29: #{tpu_custom_call.1} parent=1 // pred_fallthru
      _
    // Predicated region
    $region30: #{tpu_custom_call.1} parent=1 // pred_check
      _
    $region31: #{tpu_custom_call.1} parent=1 // pred_check_branch
      %68 = sbr.rel (0) target = $region33
    $region32: #{tpu_custom_call.1} parent=1 // pred_region
      %70 = dma.done [#allocation8], 128
    $region33: #{tpu_custom_call.1} parent=1 // pred_fallthru
      _
    %71 = sfence
    %s72 = sld [smem:[#allocation2]]
    %s73 = sld [smem:[#allocation2 + $0x1]]
    %s74 = sld [smem:[#allocation2 + $0x2]]
    %s75 = sld [smem:[#allocation2 + $0x3]]
    %s76 = sld [smem:[#allocation2 + $0x4]]
    %v77 = vld [vmem:[#allocation6] sm:$0xff]
    %v78 = vld [vmem:[#allocation7] sm:$0xff]
    %v79 = vld [vmem:[#allocation9] sm:$0xff]
    %vm80 = vcmask 261120
    %v82 = vsel %vm80, %v77, 0
    %v85 = vsel %vm80, %v78, 0
    %87 = vmatpush.xpose.msra.mxu0 0.0
    %88 = vmatpush.xpose.msra.mxu0 0.0
    %89 = vmatpush.xpose.msra.mxu0 0.0
    %90 = vmatpush.xpose.msra.mxu0 0.0
    %91 = vmatpush.xpose.msra.mxu0 0.0
    %92 = vmatpush.xpose.msra.mxu0 0.0
    %93 = vmatpush.xpose.msra.mxu0 0.0
    %94 = vmatpush.xpose.msra.mxu0 0.0
    %95 = vmatpush.xpose.msra.mxu0 0.0
    %96 = vmatpush.xpose.msra.mxu0 0.0
    %97 = vmatpush.xpose.msra.mxu0 0.0
    %98 = vmatpush.xpose.msra.mxu0 0.0
    %99 = vmatpush.xpose.msra.mxu0 0.0
    %100 = vmatpush.xpose.msra.mxu0 0.0
    %101 = vmatpush.xpose.msra.mxu0 0.0
    %102 = vmatpush.xpose.msra.mxu0 %v85
    %103 = vmatmul.f32.gmra.mxu0 %v82
    %v104 = vpop.f32.mrf.mxu0
    %v105 = vadd.f32 0.0, %v104
    %106 = vdwg.mxu0
    %v108 = vsel %vm80, %v79, 0
    %110 = vmatpush.xpose.msra.mxu0 0.0
    %111 = vmatpush.xpose.msra.mxu0 0.0
    %112 = vmatpush.xpose.msra.mxu0 0.0
    %113 = vmatpush.xpose.msra.mxu0 0.0
    %114 = vmatpush.xpose.msra.mxu0 0.0
    %115 = vmatpush.xpose.msra.mxu0 0.0
    %116 = vmatpush.xpose.msra.mxu0 0.0
    %117 = vmatpush.xpose.msra.mxu0 0.0
    %118 = vmatpush.xpose.msra.mxu0 0.0
    %119 = vmatpush.xpose.msra.mxu0 0.0
    %120 = vmatpush.xpose.msra.mxu0 0.0
    %121 = vmatpush.xpose.msra.mxu0 0.0
    %122 = vmatpush.xpose.msra.mxu0 0.0
    %123 = vmatpush.xpose.msra.mxu0 0.0
    %124 = vmatpush.xpose.msra.mxu0 0.0
    %125 = vmatpush.xpose.msra.mxu0 %v108
    %126 = vmatmul.f32.gmra.mxu0 %v82
    %v127 = vpop.f32.mrf.mxu0
    %v128 = vadd.f32 0.0, %v127
    %129 = vmatmul.f32.gmra.mxu0 %v85
    %v130 = vpop.f32.mrf.mxu0
    %v131 = vadd.f32 0.0, %v130
    %132 = vdwg.mxu0
    %v133 = vstv %s72
    %v134 = vmul.f32 %v105, %v133
    %v135 = vstv %s73
    %v136 = vmul.f32 %v128, %v135
    %v137 = vmul.f32 %v131, %v135
    %v138 = vmul.f32 %v77, %v78
    %v139 = vsel %vm80, %v138, 0.0
    %140 = vadd.xlane.f32.xlu0 %v139
    %v141 = vpop.xlane.xlu0 %140
    %v142 = vmul.f32 %v141, %v133
    %v143 = vmul.f32 %v77, %v79
    %v144 = vsel %vm80, %v143, 0.0
    %145 = vadd.xlane.f32.xlu0 %v144
    %v146 = vpop.xlane.xlu0 %145
    %v147 = vmul.f32 %v146, %v135
    %v148 = vmul.f32 %v78, %v79
    %v149 = vsel %vm80, %v148, 0.0
    %150 = vadd.xlane.f32.xlu0 %v149
    %v151 = vpop.xlane.xlu0 %150
    %v152 = vmul.f32 %v151, %v135
    %v153 = vlaneseq
    %v154 = vand.u32 %v153, 127
    %v155 = vlaneseq
    %v156 = vshrl.u32 %v155, 7
    %vm157 = vcmask 64512
    %v158 = vsel %vm157, %v134, -inf
    %159 = vmax.xlane.f32.xlu0 %v158
    %v160 = vpop.xlane.xlu0 %159
    %v161 = vsub.f32 %v134, %v160
    %v162 = vmul.f32 %v161, 1.442695
    %v163 = vpow.pop %v162
    %v164 = vsel %vm157, %v163, 0.0
    %165 = vadd.xlane.f32.xlu0 %v164
    %v166 = vpop.xlane.xlu0 %165
    %v167 = vlog2.pop %v166
    %v168 = vmul.f32 %v167, 0.6931472
    %v169 = vadd.f32 %v160, %v168
    %v170 = vrot.slane %v158, 4
    %v171 = vmax.f32 %v158, %v170
    %v172 = vrot.slane %v171, 2
    %v173 = vmax.f32 %v171, %v172
    %v174 = vrot.slane %v173, 1
    %v175 = vmax.f32 %v173, %v174
    %v176 = vsub.f32 %v134, %v175
    %v177 = vmul.f32 %v176, 1.442695
    %v178 = vpow.pop %v177
    %v179 = vsel %vm157, %v178, 0.0
    %v180 = vrot.slane %v179, 4
    %v181 = vadd.f32 %v179, %v180
    %v182 = vrot.slane %v181, 2
    %v183 = vadd.f32 %v181, %v182
    %v184 = vrot.slane %v183, 1
    %v185 = vadd.f32 %v183, %v184
    %v186 = vlog2.pop %v185
    %v187 = vmul.f32 %v186, 0.6931472
    %v188 = vadd.f32 %v175, %v187
    %v189 = vsub.f32 %v169, %v142
    %v190 = vrot.slane %v189, 4
    %v191 = vadd.f32 %v189, %v190
    %v192 = vrot.slane %v191, 2
    %v193 = vadd.f32 %v191, %v192
    %v194 = vrot.slane %v193, 1
    %v195 = vadd.f32 %v193, %v194
    %v196 = vsel %vm157, %v188, 0.0
    %197 = vadd.xlane.f32.xlu0 %v196
    %v198 = vpop.xlane.xlu0 %197
    %v199 = vrot.slane %v142, 4
    %v200 = vadd.f32 %v142, %v199
    %v201 = vrot.slane %v200, 2
    %v202 = vadd.f32 %v200, %v201
    %v203 = vrot.slane %v202, 1
    %v204 = vadd.f32 %v202, %v203
    %v205 = vsub.f32 %v198, %v204
    %v206 = vadd.f32 %v195, %v205
    %v207 = vmul.f32 %v206, 0.5
    %v208 = vmul.f32 %v207, 0.125
    %vm209 = vcmp.eq.f32.partialorder %v134, %v160
    %v210 = vsel %vm209, %v154, 1073741824
    %v211 = vsel %vm157, %v210, 2147483647
    %v212 = vand.u32 %v211, 65535
    %v213 = vshra.s32 %v211, 16
    %v214 = vcvt.s32.f32 %v212
    %v215 = vcvt.s32.f32 %v213
    %216 = vmin.xlane.f32.xlu0 %v215
    %v217 = vpop.xlane.xlu0 %216
    %vm218 = vcmp.eq.f32.partialorder %v215, %v217
    %v219 = vsel %vm218, %v214, inf
    %220 = vmin.xlane.f32.xlu0 %v219
    %v221 = vpop.xlane.xlu0 %220
    %v222 = vcvt.f32.s32 %v221
    %v223 = vcvt.f32.s32 %v217
    %v224 = vshll.u32 %v223, 16
    %v225 = vadd.s32 %v224, %v222
    %vm226 = vcmp.eq.s32.totalorder %v225, %v156
    %v227 = vsel %vm226, 1, 0
    %v228 = vcvt.s32.f32 %v227
    %v229 = vrot.slane %v228, 4
    %v230 = vadd.f32 %v228, %v229
    %v231 = vrot.slane %v230, 2
    %v232 = vadd.f32 %v230, %v231
    %v233 = vrot.slane %v232, 1
    %v234 = vadd.f32 %v232, %v233
    %v235 = vmul.f32 %v234, 100.0
    %v236 = vmul.f32 %v235, 0.125
    %v237 = vsel %vm157, %v136, -inf
    %238 = vmax.xlane.f32.xlu0 %v237
    %v239 = vpop.xlane.xlu0 %238
    %v240 = vsub.f32 %v136, %v239
    %v241 = vmul.f32 %v240, 1.442695
    %v242 = vpow.pop %v241
    %v243 = vsel %vm157, %v242, 0.0
    %244 = vadd.xlane.f32.xlu0 %v243
    %v245 = vpop.xlane.xlu0 %244
    %v246 = vlog2.pop %v245
    %v247 = vmul.f32 %v246, 0.6931472
    %v248 = vadd.f32 %v239, %v247
    %v249 = vsel %vm157, %v137, -inf
    %250 = vmax.xlane.f32.xlu0 %v249
    %v251 = vpop.xlane.xlu0 %250
    %v252 = vsub.f32 %v137, %v251
    %v253 = vmul.f32 %v252, 1.442695
    %v254 = vpow.pop %v253
    %v255 = vsel %vm157, %v254, 0.0
    %256 = vadd.xlane.f32.xlu0 %v255
    %v257 = vpop.xlane.xlu0 %256
    %v258 = vlog2.pop %v257
    %v259 = vmul.f32 %v258, 0.6931472
    %v260 = vadd.f32 %v251, %v259
    %v261 = vsub.f32 %v248, %v147
    %v262 = vrot.slane %v261, 4
    %v263 = vadd.f32 %v261, %v262
    %v264 = vrot.slane %v263, 2
    %v265 = vadd.f32 %v263, %v264
    %v266 = vrot.slane %v265, 1
    %v267 = vadd.f32 %v265, %v266
    %v268 = vsub.f32 %v260, %v152
    %v269 = vrot.slane %v268, 4
    %v270 = vadd.f32 %v268, %v269
    %v271 = vrot.slane %v270, 2
    %v272 = vadd.f32 %v270, %v271
    %v273 = vrot.slane %v272, 1
    %v274 = vadd.f32 %v272, %v273
    %v275 = vadd.f32 %v267, %v274
    %v276 = vmul.f32 %v275, 0.5
    %v277 = vmul.f32 %v276, 0.125
    %vm278 = vcmp.eq.f32.partialorder %v136, %v239
    %v279 = vsel %vm278, %v154, 1073741824
    %v280 = vsel %vm157, %v279, 2147483647
    %v281 = vand.u32 %v280, 65535
    %v282 = vshra.s32 %v280, 16
    %v283 = vcvt.s32.f32 %v281
    %v284 = vcvt.s32.f32 %v282
    %285 = vmin.xlane.f32.xlu0 %v284
    %v286 = vpop.xlane.xlu0 %285
    %vm287 = vcmp.eq.f32.partialorder %v284, %v286
    %v288 = vsel %vm287, %v283, inf
    %289 = vmin.xlane.f32.xlu0 %v288
    %v290 = vpop.xlane.xlu0 %289
    %v291 = vcvt.f32.s32 %v290
    %v292 = vcvt.f32.s32 %v286
    %v293 = vshll.u32 %v292, 16
    %v294 = vadd.s32 %v293, %v291
    %vm295 = vcmp.eq.s32.totalorder %v294, %v156
    %v296 = vsel %vm295, 1, 0
    %v297 = vcvt.s32.f32 %v296
    %v298 = vrot.slane %v297, 4
    %v299 = vadd.f32 %v297, %v298
    %v300 = vrot.slane %v299, 2
    %v301 = vadd.f32 %v299, %v300
    %v302 = vrot.slane %v301, 1
    %v303 = vadd.f32 %v301, %v302
    %v304 = vmul.f32 %v303, 100.0
    %v305 = vmul.f32 %v304, 0.125
    %v306 = vsub.f32 %v136, %v248
    %v307 = vsub.f32 %v137, %v260
    %v308 = vrcp.pop %v257
    %v309 = vmul.f32 %v257, %v308
    %v310 = vsub.f32 1.0, %v309
    %v311 = vmul.f32 %v308, %v310
    %v312 = vadd.f32 %v308, %v311
    %vm313 = vweird.f32 %v257
    %vm314 = vweird.f32 %v308
    %vm315 = vmor %vm313, %vm314
    %v316 = vsel %vm315, %v308, %v312
    %v317 = vand.u32 2147483647, %v257
    %vm318 = vcmp.eq.f32.partialorder %v317, 8.507059e+37
    %v319 = vand.u32 %v257, 2147483648
    %v320 = vor.u32 1.1754944e-38, %v319
    %v321 = vsel %vm318, %v320, %v316
    %v322 = vmul.f32 %v254, %v321
    %v323 = vsub.f32 %v307, %v306
    %v324 = vmul.f32 %v322, %v323
    %v325 = vsel %vm157, %v324, 0.0
    %326 = vadd.xlane.f32.xlu0 %v325
    %v327 = vpop.xlane.xlu0 %326
    %v328 = vrot.slane %v327, 4
    %v329 = vadd.f32 %v327, %v328
    %v330 = vrot.slane %v329, 2
    %v331 = vadd.f32 %v329, %v330
    %v332 = vrot.slane %v331, 1
    %v333 = vadd.f32 %v331, %v332
    %v334 = vmul.f32 %v333, 0.125
    %v335 = vstv %s74
    %v336 = vmul.f32 %v335, %v208
    %v337 = vstv %s75
    %v338 = vmul.f32 %v337, %v277
    %v339 = vadd.f32 %v336, %v338
    %v340 = vstv %s76
    %v341 = vmul.f32 %v340, %v334
    %v342 = vadd.f32 %v339, %v341
    %vm343 = vcmp.eq.s32.totalorder %v154, 0
    %v344 = vsel %vm343, %v342, 0.0
    %v345 = vadd.f32 %v344, 0.0
    %vm346 = vcmp.eq.s32.totalorder %v154, 1
    %v347 = vsel %vm346, %v236, 0.0
    %v348 = vadd.f32 %v345, %v347
    %vm349 = vcmp.eq.s32.totalorder %v154, 2
    %v350 = vsel %vm349, %v208, 0.0
    %v351 = vadd.f32 %v348, %v350
    %vm352 = vcmp.eq.s32.totalorder %v154, 3
    %v353 = vsel %vm352, %v277, 0.0
    %v354 = vadd.f32 %v351, %v353
    %vm355 = vcmp.eq.s32.totalorder %v154, 4
    %v356 = vsel %vm355, %v305, 0.0
    %v357 = vadd.f32 %v354, %v356
    %vm358 = vcmp.eq.s32.totalorder %v154, 5
    %v359 = vsel %vm358, %v334, 0.0
    %v360 = vadd.f32 %v357, %v359
    %vm361 = vcmask 57344
    %362 = vst.msk [vmem:[#allocation10] sm:$0x1] %vm361, %v360
    // Predicated region
    $region34: #{tpu_custom_call.1} parent=1 // pred_check
      _
    $region35: #{tpu_custom_call.1} parent=1 // pred_check_branch
      %364 = sbr.rel (0) target = $region37
    $region36: #{tpu_custom_call.1} parent=1 // pred_region
      %366 = vsyncadd [#allocation4], 0
      %s368 = sshll.u32 [#allocation10], 4
      %s369 = int_to_ptr.vmem [resolvable:$true] %s368
      %s370 = sshll.u32 %s4, 4
      %s371 = int_to_ptr.hbm [resolvable:$true] %s370
      %373 = dma.vmem_to_hbm [thread:$0]  %s369, 16, %s371, [#allocation4]
    $region37: #{tpu_custom_call.1} parent=1 // pred_fallthru
      _
    // Predicated region
    $region38: #{tpu_custom_call.1} parent=1 // pred_check
      _
    $region39: #{tpu_custom_call.1} parent=1 // pred_check_branch
      %375 = sbr.rel (0) target = $region41
    $region40: #{tpu_custom_call.1} parent=1 // pred_region
      %377 = dma.done [#allocation4], 16
    $region41: #{tpu_custom_call.1} parent=1 // pred_fallthru
      _
    %378 = vsyncpa [#allocation3], 1
    %379 = vsyncpa [#allocation8], 1
    %380 = vsyncpa [#allocation4], 1
    %381 = vsyncpa [#allocation5], 1

</llo_original>
